<compile_context>
chip_gen: v5e
topology: v5e:2x2
jax: 0.10.0
libtpu: 0.0.40
codegen_flags: <defaults>
</compile_context>

<pallas_src>
import functools

import jax
import jax.numpy as jnp
from jax import lax
from jax.experimental import pallas as pl
from jax.experimental.pallas import tpu as pltpu

LANES = 128
DEFAULT_TILE_ROWS = 4096  # (4096,128) f32 tile = 2 MiB; 2 in x 2 buf = 8 MiB


def _dice_partial_kernel(p_ref, t_ref, o_ref, *, total_rows, tile_rows):
    i = pl.program_id(0)

    p = p_ref[...].astype(jnp.float32)
    t = t_ref[...].astype(jnp.float32)

    # Only compiled in when the row count does not divide evenly into tiles:
    # the final block's window overruns the array and its out-of-bounds rows
    # hold unspecified data, so zero them out of all three sums.
    if total_rows % tile_rows != 0:
        row_ids = i * tile_rows + lax.broadcasted_iota(
            jnp.int32, (tile_rows, LANES), 0)
        valid = (row_ids < total_rows).astype(jnp.float32)
        p = p * valid
        t = t * valid

    # Lane-shaped per-block partial sums (sublane reduce only, VPU/XLU work).
    # Row 0: sum(p*t), row 1: sum(p), row 2: sum(t).  Blocks are independent,
    # so the grid axis can be megacore-parallel.
    sums = jnp.concatenate(
        [jnp.sum(p * t, axis=0, keepdims=True),
         jnp.sum(p, axis=0, keepdims=True),
         jnp.sum(t, axis=0, keepdims=True)],
        axis=0)  # (3, LANES)
    o_ref[0] = sums


def dice_loss(pred, target, smooth=1.0, max_tile_rows=DEFAULT_TILE_ROWS):
    """pred, target: [N, 1] (or any shape/dtype); returns scalar f32 loss."""
    assert max_tile_rows % 8 == 0, "tile rows must be a multiple of 8"
    pred = pred.reshape(-1)
    target = target.reshape(-1)
    n = pred.shape[0]

    # Lane-dense 2-D view (rows, 128).  Padding is only needed when n is not a
    # multiple of 128; the zero tail does not perturb any of the three sums.
    # No dtype cast here -- the kernel casts per-tile.
    n128 = pl.cdiv(n, LANES) * LANES
    if n128 != n:
        pred = jnp.pad(pred, (0, n128 - n))
        target = jnp.pad(target, (0, n128 - n))
    rows = n128 // LANES
    pred = pred.reshape(rows, LANES)
    target = target.reshape(rows, LANES)

    # Full-array block when small (allowed: equals the array dim), otherwise a
    # large multiple-of-8 row tile; the ragged last tile is masked in-kernel.
    tile_rows = rows if rows <= max_tile_rows else max_tile_rows
    grid_n = pl.cdiv(rows, tile_rows)

    kernel = functools.partial(_dice_partial_kernel,
                               total_rows=rows, tile_rows=tile_rows)
    partials = pl.pallas_call(
        kernel,
        out_shape=jax.ShapeDtypeStruct((grid_n, 3, LANES), jnp.float32),
        grid_spec=pltpu.PrefetchScalarGridSpec(
            num_scalar_prefetch=0,
            grid=(grid_n,),
            in_specs=[
                pl.BlockSpec((tile_rows, LANES), lambda i: (i, 0)),
                pl.BlockSpec((tile_rows, LANES), lambda i: (i, 0)),
            ],
            out_specs=pl.BlockSpec((1, 3, LANES), lambda i: (i, 0, 0)),
        ),
        compiler_params=pltpu.CompilerParams(
            dimension_semantics=("parallel",)),  # blocks independent -> v7x 2-TC
    )(pred, target)

    # Tiny final reduce (grid_n x 3 x 128 f32) in plain XLA.
    inter = jnp.sum(partials[:, 0, :])
    z = jnp.sum(partials[:, 1, :]) + jnp.sum(partials[:, 2, :]) + smooth
    return 1.0 - (2.0 * inter + smooth) / z


if __name__ == "__main__":
    key = jax.random.PRNGKey(0)
    k1, k2, k3, k4 = jax.random.split(key, 4)

    def ref_dice(pred, target, smooth=1.0):
        p = pred.astype(jnp.float32).reshape(-1)
        t = target.astype(jnp.float32).reshape(-1)
        inter = jnp.sum(p * t)
        z = jnp.sum(p) + jnp.sum(t) + smooth
        return 1.0 - (2.0 * inter + smooth) / z

    # [N, 1] inputs as in the PyTorch module; N not a multiple of 128.
    N = 500
    pred = jax.nn.sigmoid(jax.random.normal(k1, (N, 1), dtype=jnp.float32))
    target = (jax.random.uniform(k2, (N, 1)) > 0.5).astype(jnp.float32)
    loss = jax.block_until_ready(dice_loss(pred, target, smooth=1.0))
    ref = ref_dice(pred, target, 1.0)
    assert jnp.allclose(loss, ref, rtol=1e-6, atol=1e-6), (loss, ref)

    # Multi-block grid with a ragged final row tile (exercises the in-kernel
    # mask and the per-block-partials / wrapper-reduce path).
    N2 = 5000
    pred2 = jax.nn.sigmoid(jax.random.normal(k3, (N2, 1), dtype=jnp.float32))
    target2 = (jax.random.uniform(k4, (N2, 1)) > 0.5).astype(jnp.float32)
    loss2 = jax.block_until_ready(
        dice_loss(pred2, target2, smooth=1.0, max_tile_rows=16))
    ref2 = ref_dice(pred2, target2, 1.0)
    assert jnp.allclose(loss2, ref2, rtol=1e-5, atol=1e-5), (loss2, ref2)

    # bf16 inputs are cast to f32 only inside the kernel (halves HBM traffic).
    loss3 = jax.block_until_ready(
        dice_loss(pred2.astype(jnp.bfloat16), target2.astype(jnp.bfloat16),
                  smooth=1.0))
    ref3 = ref_dice(pred2.astype(jnp.bfloat16), target2.astype(jnp.bfloat16),
                    1.0)
    assert jnp.allclose(loss3, ref3, rtol=1e-4, atol=1e-4), (loss3, ref3)

    print("KERNEL_OK")
</pallas_src>

<mosaic_0001>
module attributes {stable_mosaic.version = 11 : i64} {
  func.func @_dice_partial_kernel(%arg0: i32, %arg1: memref<4x128xf32, #tpu.memory_space<vmem>>, %arg2: memref<4x128xf32, #tpu.memory_space<vmem>>, %arg3: memref<1x3x128xf32, #tpu.memory_space<vmem>>) attributes {dimension_semantics = [#tpu.dimension_semantics<parallel>], iteration_bounds = array<i64: 1>, scalar_prefetch = 0 : i64, scratch_operands = 0 : i64, tpu.core_type = #tpu.core_type<tc>, window_params = [{transform_indices = @transform_0, window_bounds = array<i64: 4, 128>}, {transform_indices = @transform_1, window_bounds = array<i64: 4, 128>}, {transform_indices = @transform_2, window_bounds = array<i64: 1, 3, 128>}]} {
    %c0 = arith.constant 0 : index
    %c0_0 = arith.constant 0 : index
    %0 = vector.load %arg1[%c0, %c0_0] : memref<4x128xf32, #tpu.memory_space<vmem>>, vector<4x128xf32>
    %c0_1 = arith.constant 0 : index
    %c0_2 = arith.constant 0 : index
    %1 = vector.load %arg2[%c0_1, %c0_2] : memref<4x128xf32, #tpu.memory_space<vmem>>, vector<4x128xf32>
    %2 = arith.mulf %0, %1 : vector<4x128xf32>
    %cst = arith.constant dense<0.000000e+00> : vector<128xf32>
    %3 = vector.multi_reduction <add>, %2, %cst [0] : vector<4x128xf32> to vector<128xf32>
    %4 = vector.shape_cast %3 : vector<128xf32> to vector<1x128xf32>
    %cst_3 = arith.constant dense<0.000000e+00> : vector<128xf32>
    %5 = vector.multi_reduction <add>, %0, %cst_3 [0] : vector<4x128xf32> to vector<128xf32>
    %6 = vector.shape_cast %5 : vector<128xf32> to vector<1x128xf32>
    %cst_4 = arith.constant dense<0.000000e+00> : vector<128xf32>
    %7 = vector.multi_reduction <add>, %1, %cst_4 [0] : vector<4x128xf32> to vector<128xf32>
    %8 = vector.shape_cast %7 : vector<128xf32> to vector<1x128xf32>
    %9 = tpu.concatenate %4, %6, %8 in 0 : vector<1x128xf32>, vector<1x128xf32>, vector<1x128xf32> -> vector<3x128xf32>
    %c0_5 = arith.constant 0 : index
    %c0_6 = arith.constant 0 : index
    %c0_7 = arith.constant 0 : index
    %10 = vector.load %arg3[%c0_5, %c0_6, %c0_7] : memref<1x3x128xf32, #tpu.memory_space<vmem>>, vector<1x3x128xf32>
    %11 = vector.shape_cast %10 : vector<1x3x128xf32> to vector<3x128xf32>
    %12 = vector.shape_cast %9 : vector<3x128xf32> to vector<1x3x128xf32>
    tpu.vector_store %arg3[%c0_5, %c0_6, %c0_7], %12 {strides = array<i32>} : memref<1x3x128xf32, #tpu.memory_space<vmem>>, vector<1x3x128xf32>,
    return
  }
  func.func @transform_0(%arg0: i32) -> (i32, i32) {
    %c0_i32 = arith.constant 0 : i32
    %c0_i32_0 = arith.constant 0 : i32
    return %arg0, %c0_i32 : i32, i32
  }
  func.func @transform_1(%arg0: i32) -> (i32, i32) {
    %c0_i32 = arith.constant 0 : i32
    %c0_i32_0 = arith.constant 0 : i32
    return %arg0, %c0_i32 : i32, i32
  }
  func.func @transform_2(%arg0: i32) -> (i32, i32, i32) {
    %c0_i32 = arith.constant 0 : i32
    %c0_i32_0 = arith.constant 0 : i32
    %c0_i32_1 = arith.constant 0 : i32
    return %arg0, %c0_i32, %c0_i32_0 : i32, i32, i32
  }
}

</mosaic_0001>

<llo_original>
// kernel: tpu_custom_call.1
$region0: #{tpu_custom_call.1}
  #allocation0 [shape = 'u32[]', space=smem, size = 0x4, offset = 0x4, fixed_abs, tag = 'smem constant byte address 0x4 - core index']
  #allocation1 [shape = 'u32[72,128]{1,0:T(1,128)}', space=vmem, size = 0x9000, scoped, tag = 'internal scratch']
  %s0 = inlined_call_operand.hbm [shape: f32[4,128], index: 0, kind: input, shape index: {}]
  %s1 = inlined_call_operand.hbm [shape: f32[4,128], index: 1, kind: input, shape index: {}]
  %s2 = inlined_call_operand.vmem [shape: f32[1,3,128], index: 2, kind: output, shape index: {}]
  %s3 = sld [smem:[#allocation0]]
  $region26: #{tpu_custom_call.1} parent=0
    _
  %s5 = ssub.s32 1, %s3
  %s6 = scalar_select 0, %s5, %s3
  $region1: #{tpu_custom_call.1} parent=0
    #allocation2 [shape = 'u8[2048]{0}', space=vmem, size = 0x800, scoped, tag = 'input window, operand 0, single buffered']
    #allocation3 [shape = 's32[1]{0}', space=sflag, size = 0x4, scoped, tag = 'scoped memory for tpu_custom_call.1']
    #allocation4 [shape = 'u8[2048]{0}', space=vmem, size = 0x800, scoped, tag = 'input window, operand 1, single buffered']
    #allocation5 [shape = 's32[1]{0}', space=sflag, size = 0x4, scoped, tag = 'scoped memory for tpu_custom_call.1']
    %7 = vsyncpa [#allocation3], 0
    %8 = vsyncpa [#allocation5], 0
    // Predicated region
    $region2: #{tpu_custom_call.1} parent=1 // pred_check
      _
    $region3: #{tpu_custom_call.1} parent=1 // pred_check_branch
      %10 = sbr.rel (0) target = $region5
    $region4: #{tpu_custom_call.1} parent=1 // pred_region
      %12 = vsyncadd [#allocation3], 0
      %s14 = sshll.u32 %s0, 4
      %s15 = int_to_ptr.hbm [resolvable:$true] %s14
      %s16 = sshll.u32 [#allocation2], 4
      %s17 = int_to_ptr.vmem [resolvable:$true] %s16
      %19 = dma.hbm_to_vmem [thread:$0]  %s15, 64, %s17, [#allocation3]
    $region5: #{tpu_custom_call.1} parent=1 // pred_fallthru
      _
    // Predicated region
    $region6: #{tpu_custom_call.1} parent=1 // pred_check
      _
    $region7: #{tpu_custom_call.1} parent=1 // pred_check_branch
      %21 = sbr.rel (0) target = $region9
    $region8: #{tpu_custom_call.1} parent=1 // pred_region
      %23 = vsyncadd [#allocation5], 0
      %s25 = sshll.u32 %s1, 4
      %s26 = int_to_ptr.hbm [resolvable:$true] %s25
      %s27 = sshll.u32 [#allocation4], 4
      %s28 = int_to_ptr.vmem [resolvable:$true] %s27
      %30 = dma.hbm_to_vmem [thread:$0]  %s26, 64, %s28, [#allocation5]
    $region9: #{tpu_custom_call.1} parent=1 // pred_fallthru
      _
    // Predicated region
    $region10: #{tpu_custom_call.1} parent=1 // pred_check
      _
    $region11: #{tpu_custom_call.1} parent=1 // pred_check_branch
      %32 = sbr.rel (0) target = $region13
    $region12: #{tpu_custom_call.1} parent=1 // pred_region
      %34 = dma.done [#allocation3], 64
    $region13: #{tpu_custom_call.1} parent=1 // pred_fallthru
      _
    // Predicated region
    $region14: #{tpu_custom_call.1} parent=1 // pred_check
      _
    $region15: #{tpu_custom_call.1} parent=1 // pred_check_branch
      %36 = sbr.rel (0) target = $region17
    $region16: #{tpu_custom_call.1} parent=1 // pred_region
      %38 = dma.done [#allocation5], 64
    $region17: #{tpu_custom_call.1} parent=1 // pred_fallthru
      _
    %v39 = vld [vmem:[#allocation2] sm:$0xf]
    %v40 = vld [vmem:[#allocation4] sm:$0xf]
    %v41 = vmul.f32 %v39, %v40
    %vm42 = vcmask 1043456
    %v43 = vsel %vm42, %v41, 0.0
    %v44 = vrot.slane %v43, 4
    %v45 = vadd.f32 %v43, %v44
    %v46 = vrot.slane %v45, 2
    %v47 = vadd.f32 %v45, %v46
    %v48 = vrot.slane %v47, 1
    %v49 = vadd.f32 %v47, %v48
    %v50 = vsel %vm42, %v39, 0.0
    %v51 = vrot.slane %v50, 4
    %v52 = vadd.f32 %v50, %v51
    %v53 = vrot.slane %v52, 2
    %v54 = vadd.f32 %v52, %v53
    %v55 = vrot.slane %v54, 1
    %v56 = vadd.f32 %v54, %v55
    %v57 = vsel %vm42, %v40, 0.0
    %v58 = vrot.slane %v57, 4
    %v59 = vadd.f32 %v57, %v58
    %v60 = vrot.slane %v59, 2
    %v61 = vadd.f32 %v59, %v60
    %v62 = vrot.slane %v61, 1
    %v63 = vadd.f32 %v61, %v62
    %vm64 = vcmask 1040384
    %v65 = vsel %vm64, %v49, %v56
    %vm66 = vcmask 1041408
    %v67 = vsel %vm66, %v65, %v63
    %68 = vst [vmem:[%s2] sm:$0x7] %v67
    // Predicated region
    $region18: #{tpu_custom_call.1} parent=1 // pred_check
      _
    $region19: #{tpu_custom_call.1} parent=1 // pred_check_branch
      %70 = sbr.rel (0) target = $region21
    $region20: #{tpu_custom_call.1} parent=1 // pred_region
      _
    $region21: #{tpu_custom_call.1} parent=1 // pred_fallthru
      _
    // Predicated region
    $region22: #{tpu_custom_call.1} parent=1 // pred_check
      _
    $region23: #{tpu_custom_call.1} parent=1 // pred_check_branch
      %72 = sbr.rel (0) target = $region25
    $region24: #{tpu_custom_call.1} parent=1 // pred_region
      _
    $region25: #{tpu_custom_call.1} parent=1 // pred_fallthru
      _
    %73 = vsyncpa [#allocation3], 1
    %74 = vsyncpa [#allocation5], 1

</llo_original>
